<compile_context>
chip_gen: v6e
topology: v6e:2x2x1
jax: 0.10.0
libtpu: 0.0.40
codegen_flags: <defaults>
</compile_context>

<pallas_src>
import jax
import jax.numpy as jnp
from jax.experimental import pallas as pl
from jax.experimental.pallas import tpu as pltpu


def _round_up(x, m):
    return ((x + m - 1) // m) * m


def _default_exp_dtype():
    """bf16 exp/matmul on bf16-native EUP/MXU generations (v6e/v7x);
    f32 elsewhere (v5e has no bf16 VPU/EUP path)."""
    try:
        kind = jax.devices()[0].device_kind.lower()
    except Exception:
        return jnp.float32
    if ("v6" in kind) or ("v7" in kind) or ("tpu7" in kind):
        return jnp.bfloat16
    return jnp.float32


def ordconv_forward(x, conv_w, conv_b, *, num_outputs, bins, lo=0.0, hi=2.0,
                    tile_p=8192, exp_dtype="auto"):
    """x: (B, C_in, H, W) NCHW float32.  conv_w: (C_out, C_in) 1x1-conv weight,
    conv_b: (C_out,), C_out = num_outputs * bins.
    Returns (B, num_outputs, H + 2, W + 2) (ReflectionPad2d(1) semantics)."""
    B, C_in, H, W = x.shape
    C_out = num_outputs * bins
    assert conv_w.shape == (C_out, C_in) and conv_b.shape == (C_out,)

    if exp_dtype == "auto":
        exp_dtype = _default_exp_dtype()
    exp_dtype = jnp.dtype(exp_dtype)

    HW = H * W
    # Pixels along lanes, channels along sublanes: zero-copy view of NCHW.
    x3 = x.reshape(B, C_in, HW)

    # Permute channels from PyTorch layout c = bin*num_outputs + out (what
    # view(B, bins, H*num_outputs, W) + softmax(dim=1) implies) to kernel
    # layout j = out*bins + bin, so each output group is a contiguous,
    # sublane-aligned run of `bins` rows (80 % 8 == 0).
    perm = (jnp.arange(bins)[None, :] * num_outputs
            + jnp.arange(num_outputs)[:, None]).reshape(-1)      # (C_out,)
    w_k = conv_w[perm].astype(jnp.float32)                       # (C_out, C_in)
    b_k = conv_b[perm].astype(jnp.float32)[:, None]              # (C_out, 1)

    # Ordinal bin weights: linspace(lo, hi, bins) (same as the PyTorch buffer).
    t = jnp.arange(bins, dtype=jnp.float32) / jnp.float32(max(bins - 1, 1))
    bin_w = t * hi + (1.0 - t) * lo                               # (bins,)
    # Row 0: weighted-sum numerator, row 1: softmax denominator -> one matmul.
    wb2 = jnp.stack([bin_w, jnp.ones_like(bin_w)], axis=0).astype(exp_dtype)

    # --- pixel tile sizing --------------------------------------------------
    # Lane-dense, multiple of 128, clamped to the problem size.
    tile = max(128, min(int(tile_p), _round_up(HW, 128)))
    tile = _round_up(tile, 128)
    # VMEM-aware cap: dominant consumers are the per-group f32 logits plus the
    # exp_dtype p (only one group live at a time), plus double-buffered input
    # and output blocks.  Budget 12 MiB keeps us under v5e's 16 MiB default
    # scoped VMEM and therefore trivially under v6e's 32 MiB / v7x's 64 MiB.
    bytes_per_pixel = (bins * (4 + exp_dtype.itemsize)   # logits f32 + p
                       + 2 * C_in * 4                    # double-buffered input
                       + 2 * num_outputs * 4)            # double-buffered output
    vmem_budget = 12 << 20
    tile_cap = max(128, (vmem_budget // bytes_per_pixel) // 128 * 128)
    tile = min(tile, tile_cap)
    # v7x megacore: keep >=2 total grid steps so both TensorCores get work.
    if B * (-(-HW // tile)) < 2 and HW > 128:
        tile = _round_up(-(-HW // 2), 128)
    grid = (B, pl.cdiv(HW, tile))   # ragged last tile is masked by Pallas

    def kernel(x_ref, w_ref, b_ref, wb_ref, o_ref):
        # NOTE: this kernel is EUP-bound (~`bins` exps per pixel) with
        # per-grid-step overhead as the secondary cost — it is NOT memory- or
        # MXU-bound.  K = C_in = 4 underfills the MXU; do not pad K, that
        # would only inflate the input DMA for no benefit.
        xin = x_ref[...]                                          # (C_in, tile)
        wb = wb_ref[...]                                          # (2, bins)
        for o in range(num_outputs):                              # static unroll
            # Per-group 1x1 conv: only (bins, tile) of logits/p live at once.
            w_o = w_ref[o * bins:(o + 1) * bins, :]               # (bins, C_in)
            b_o = b_ref[o * bins:(o + 1) * bins, :]               # (bins, 1)
            lg = jnp.dot(w_o, xin,
                         preferred_element_type=jnp.float32) + b_o  # (bins, tile) f32
            m = jnp.max(lg, axis=0, keepdims=True)                # per-pixel max, f32
            # Softmax numerators: bf16 on v6e/v7x (native EUP/MXU), f32 on v5e.
            p = jnp.exp((lg - m).astype(exp_dtype))               # (bins, tile)
            # Bin-weighted numerator + softmax denominator in one small matmul.
            r = jnp.dot(wb, p, preferred_element_type=jnp.float32)  # (2, tile)
            # Write this group's rows directly (no concat epilogue).
            o_ref[o:o + 1, :] = r[0:1, :] / r[1:2, :]

    out3 = pl.pallas_call(
        kernel,
        out_shape=jax.ShapeDtypeStruct((B, num_outputs, HW), jnp.float32),
        grid=grid,
        in_specs=[
            pl.BlockSpec((None, C_in, tile), lambda b, i: (b, 0, i)),
            pl.BlockSpec((C_out, C_in), lambda b, i: (0, 0)),
            pl.BlockSpec((C_out, 1), lambda b, i: (0, 0)),
            pl.BlockSpec((2, bins), lambda b, i: (0, 0)),
        ],
        out_specs=pl.BlockSpec((None, num_outputs, tile), lambda b, i: (b, 0, i)),
        compiler_params=pltpu.CompilerParams(
            dimension_semantics=("parallel", "parallel")),
    )(x3, w_k, b_k, wb2)

    out = out3.reshape(B, num_outputs, H, W)
    # ReflectionPad2d(1) applied to the small output (exactly equivalent to
    # padding the input first, since conv/softmax/weighted-sum are pointwise
    # per pixel).
    return jnp.pad(out, ((0, 0), (0, 0), (1, 1), (1, 1)), mode="reflect")


def ordconv_ref(x, conv_w, conv_b, num_outputs, bins, lo=0.0, hi=2.0):
    """Pure-JAX replica of the PyTorch forward (for verification)."""
    xp = jnp.pad(x, ((0, 0), (0, 0), (1, 1), (1, 1)), mode="reflect")
    y = jnp.einsum("oc,bchw->bohw", conv_w, xp) + conv_b[None, :, None, None]
    B, _, Hp, Wp = y.shape
    y = y.reshape(B, bins, Hp * num_outputs, Wp)
    y = jax.nn.softmax(y, axis=1)
    t = jnp.arange(bins, dtype=jnp.float32) / (bins - 1)
    wb = (t * hi + (1.0 - t) * lo)[None, :, None, None]
    out = jnp.sum(y * wb, axis=1)
    return out.reshape(B, num_outputs, Hp, Wp)


if __name__ == "__main__":
    key = jax.random.PRNGKey(0)
    # Small shapes consistent with the module: feats_in=4, num_outputs=2, bins=80.
    B, C_in, H, W = 2, 4, 16, 16
    num_outputs, bins = 2, 80
    C_out = num_outputs * bins

    k1, k2, k3, k4 = jax.random.split(key, 4)
    x = jax.random.normal(k1, (B, C_in, H, W), dtype=jnp.float32)
    conv_w = 0.1 * jax.random.normal(k2, (C_out, C_in), dtype=jnp.float32)  # 1x1 conv weight
    conv_b = 0.1 * jax.random.normal(k3, (C_out,), dtype=jnp.float32)

    ref = ordconv_ref(x, conv_w, conv_b, num_outputs, bins, lo=0.0, hi=2.0)

    # 1) Forced f32 path: bit-level-close to the reference on every generation.
    out32 = ordconv_forward(x, conv_w, conv_b, num_outputs=num_outputs,
                            bins=bins, lo=0.0, hi=2.0, exp_dtype=jnp.float32)
    out32 = jax.block_until_ready(out32)
    assert out32.shape == (B, num_outputs, H + 2, W + 2)
    assert jnp.allclose(out32, ref, atol=1e-4, rtol=1e-4), \
        "Pallas kernel (f32) mismatch vs reference"

    # 2) Auto path: bf16 exp on v6e/v7x (loosened tolerance), f32 elsewhere.
    out = ordconv_forward(x, conv_w, conv_b, num_outputs=num_outputs,
                          bins=bins, lo=0.0, hi=2.0)
    out = jax.block_until_ready(out)
    tol = 1e-4 if _default_exp_dtype() == jnp.float32 else 3e-2
    assert jnp.allclose(out, ref, atol=tol, rtol=tol), \
        "Pallas kernel (auto dtype) mismatch vs reference"

    # 3) Ragged last-tile path (HW % 128 != 0) with a single-batch input, which
    #    also exercises the >=2-grid-steps tile split.
    x2 = jax.random.normal(k4, (1, C_in, 15, 15), dtype=jnp.float32)
    out2 = ordconv_forward(x2, conv_w, conv_b, num_outputs=num_outputs,
                           bins=bins, lo=0.0, hi=2.0, exp_dtype=jnp.float32)
    out2 = jax.block_until_ready(out2)
    ref2 = ordconv_ref(x2, conv_w, conv_b, num_outputs, bins, lo=0.0, hi=2.0)
    assert out2.shape == (1, num_outputs, 17, 17)
    assert jnp.allclose(out2, ref2, atol=1e-4, rtol=1e-4), \
        "Pallas kernel (ragged tile) mismatch vs reference"

    print("KERNEL_OK")
</pallas_src>

<mosaic_0001>
module attributes {stable_mosaic.version = 11 : i64} {
  func.func @kernel(%arg0: i32, %arg1: i32, %arg2: memref<1x4x256xf32, #tpu.memory_space<vmem>>, %arg3: memref<160x4xf32, #tpu.memory_space<vmem>>, %arg4: memref<160x1xf32, #tpu.memory_space<vmem>>, %arg5: memref<2x80xf32, #tpu.memory_space<vmem>>, %arg6: memref<1x2x256xf32, #tpu.memory_space<vmem>>) attributes {dimension_semantics = [#tpu.dimension_semantics<parallel>, #tpu.dimension_semantics<parallel>], iteration_bounds = array<i64: 2, 1>, scalar_prefetch = 0 : i64, scratch_operands = 0 : i64, tpu.core_type = #tpu.core_type<tc>, window_params = [{transform_indices = @transform_0, window_bounds = array<i64: 1, 4, 256>}, {pipeline_mode = #tpu.pipeline_mode<synchronous>, transform_indices = @transform_1, window_bounds = array<i64: 160, 4>}, {pipeline_mode = #tpu.pipeline_mode<synchronous>, transform_indices = @transform_2, window_bounds = array<i64: 160, 1>}, {pipeline_mode = #tpu.pipeline_mode<synchronous>, transform_indices = @transform_3, window_bounds = array<i64: 2, 80>}, {transform_indices = @transform_4, window_bounds = array<i64: 1, 2, 256>}]} {
    %c0 = arith.constant 0 : index
    %c0_0 = arith.constant 0 : index
    %c0_1 = arith.constant 0 : index
    %0 = vector.load %arg2[%c0, %c0_0, %c0_1] : memref<1x4x256xf32, #tpu.memory_space<vmem>>, vector<1x4x256xf32>
    %1 = vector.shape_cast %0 : vector<1x4x256xf32> to vector<4x256xf32>
    %c0_2 = arith.constant 0 : index
    %c0_3 = arith.constant 0 : index
    %2 = vector.load %arg5[%c0_2, %c0_3] : memref<2x80xf32, #tpu.memory_space<vmem>>, vector<2x80xf32>
    %c0_4 = arith.constant 0 : index
    %c0_5 = arith.constant 0 : index
    %3 = vector.load %arg3[%c0_4, %c0_5] : memref<160x4xf32, #tpu.memory_space<vmem>>, vector<80x4xf32>
    %c0_6 = arith.constant 0 : index
    %c0_7 = arith.constant 0 : index
    %4 = vector.load %arg4[%c0_6, %c0_7] : memref<160x1xf32, #tpu.memory_space<vmem>>, vector<80x1xf32>
    %cst = arith.constant dense<0.000000e+00> : vector<80x256xf32>
    %5 = tpu.matmul %3, %1, %cst {dimension_numbers = #tpu.dot_dimension_numbers<[1], [0], [0], [1], [0, 0, 1, 1], [], []>} : vector<80x4xf32>, vector<4x256xf32>, vector<80x256xf32> -> vector<80x256xf32>
    %6 = vector.broadcast %4 : vector<80x1xf32> to vector<80x256xf32>
    %7 = arith.addf %5, %6 : vector<80x256xf32>
    %cst_8 = arith.constant dense<0xFF800000> : vector<256xf32>
    %8 = vector.multi_reduction <maximumf>, %7, %cst_8 [0] : vector<80x256xf32> to vector<256xf32>
    %9 = vector.shape_cast %8 : vector<256xf32> to vector<1x256xf32>
    %10 = vector.broadcast %9 : vector<1x256xf32> to vector<80x256xf32>
    %11 = arith.subf %7, %10 : vector<80x256xf32>
    %12 = math.exp %11 : vector<80x256xf32>
    %cst_9 = arith.constant dense<0.000000e+00> : vector<2x256xf32>
    %13 = tpu.matmul %2, %12, %cst_9 {dimension_numbers = #tpu.dot_dimension_numbers<[1], [0], [0], [1], [0, 0, 1, 1], [], []>} : vector<2x80xf32>, vector<80x256xf32>, vector<2x256xf32> -> vector<2x256xf32>
    %14 = vector.extract_strided_slice %13 {offsets = [0, 0], sizes = [1, 256], strides = [1, 1]} : vector<2x256xf32> to vector<1x256xf32>
    %15 = vector.extract_strided_slice %13 {offsets = [1, 0], sizes = [1, 256], strides = [1, 1]} : vector<2x256xf32> to vector<1x256xf32>
    %16 = arith.divf %14, %15 : vector<1x256xf32>
    %c0_10 = arith.constant 0 : index
    %c0_11 = arith.constant 0 : index
    %c0_12 = arith.constant 0 : index
    %17 = vector.load %arg6[%c0_10, %c0_11, %c0_12] : memref<1x2x256xf32, #tpu.memory_space<vmem>>, vector<1x1x256xf32>
    %18 = vector.shape_cast %17 : vector<1x1x256xf32> to vector<1x256xf32>
    %19 = vector.shape_cast %16 : vector<1x256xf32> to vector<1x1x256xf32>
    tpu.vector_store %arg6[%c0_10, %c0_11, %c0_12], %19 {strides = array<i32>} : memref<1x2x256xf32, #tpu.memory_space<vmem>>, vector<1x1x256xf32>,
    %c80 = arith.constant 80 : index
    %c0_13 = arith.constant 0 : index
    %20 = vector.load %arg3[%c80, %c0_13] : memref<160x4xf32, #tpu.memory_space<vmem>>, vector<80x4xf32>
    %c80_14 = arith.constant 80 : index
    %c0_15 = arith.constant 0 : index
    %21 = vector.load %arg4[%c80_14, %c0_15] : memref<160x1xf32, #tpu.memory_space<vmem>>, vector<80x1xf32>
    %cst_16 = arith.constant dense<0.000000e+00> : vector<80x256xf32>
    %22 = tpu.matmul %20, %1, %cst_16 {dimension_numbers = #tpu.dot_dimension_numbers<[1], [0], [0], [1], [0, 0, 1, 1], [], []>} : vector<80x4xf32>, vector<4x256xf32>, vector<80x256xf32> -> vector<80x256xf32>
    %23 = vector.broadcast %21 : vector<80x1xf32> to vector<80x256xf32>
    %24 = arith.addf %22, %23 : vector<80x256xf32>
    %cst_17 = arith.constant dense<0xFF800000> : vector<256xf32>
    %25 = vector.multi_reduction <maximumf>, %24, %cst_17 [0] : vector<80x256xf32> to vector<256xf32>
    %26 = vector.shape_cast %25 : vector<256xf32> to vector<1x256xf32>
    %27 = vector.broadcast %26 : vector<1x256xf32> to vector<80x256xf32>
    %28 = arith.subf %24, %27 : vector<80x256xf32>
    %29 = math.exp %28 : vector<80x256xf32>
    %cst_18 = arith.constant dense<0.000000e+00> : vector<2x256xf32>
    %30 = tpu.matmul %2, %29, %cst_18 {dimension_numbers = #tpu.dot_dimension_numbers<[1], [0], [0], [1], [0, 0, 1, 1], [], []>} : vector<2x80xf32>, vector<80x256xf32>, vector<2x256xf32> -> vector<2x256xf32>
    %31 = vector.extract_strided_slice %30 {offsets = [0, 0], sizes = [1, 256], strides = [1, 1]} : vector<2x256xf32> to vector<1x256xf32>
    %32 = vector.extract_strided_slice %30 {offsets = [1, 0], sizes = [1, 256], strides = [1, 1]} : vector<2x256xf32> to vector<1x256xf32>
    %33 = arith.divf %31, %32 : vector<1x256xf32>
    %c0_19 = arith.constant 0 : index
    %c1 = arith.constant 1 : index
    %c0_20 = arith.constant 0 : index
    %34 = vector.load %arg6[%c0_19, %c1, %c0_20] : memref<1x2x256xf32, #tpu.memory_space<vmem>>, vector<1x1x256xf32>
    %35 = vector.shape_cast %34 : vector<1x1x256xf32> to vector<1x256xf32>
    %36 = vector.shape_cast %33 : vector<1x256xf32> to vector<1x1x256xf32>
    tpu.vector_store %arg6[%c0_19, %c1, %c0_20], %36 {strides = array<i32>} : memref<1x2x256xf32, #tpu.memory_space<vmem>>, vector<1x1x256xf32>,
    return
  }
  func.func @transform_0(%arg0: i32, %arg1: i32) -> (i32, i32, i32) {
    %c0_i32 = arith.constant 0 : i32
    %c0_i32_0 = arith.constant 0 : i32
    return %arg0, %c0_i32, %arg1 : i32, i32, i32
  }
  func.func @transform_1(%arg0: i32, %arg1: i32) -> (i32, i32) {
    %c0_i32 = arith.constant 0 : i32
    %c0_i32_0 = arith.constant 0 : i32
    %c0_i32_1 = arith.constant 0 : i32
    return %c0_i32, %c0_i32_0 : i32, i32
  }
  func.func @transform_2(%arg0: i32, %arg1: i32) -> (i32, i32) {
    %c0_i32 = arith.constant 0 : i32
    %c0_i32_0 = arith.constant 0 : i32
    %c0_i32_1 = arith.constant 0 : i32
    return %c0_i32, %c0_i32_0 : i32, i32
  }
  func.func @transform_3(%arg0: i32, %arg1: i32) -> (i32, i32) {
    %c0_i32 = arith.constant 0 : i32
    %c0_i32_0 = arith.constant 0 : i32
    %c0_i32_1 = arith.constant 0 : i32
    return %c0_i32, %c0_i32_0 : i32, i32
  }
  func.func @transform_4(%arg0: i32, %arg1: i32) -> (i32, i32, i32) {
    %c0_i32 = arith.constant 0 : i32
    %c0_i32_0 = arith.constant 0 : i32
    return %arg0, %c0_i32, %arg1 : i32, i32, i32
  }
}

</mosaic_0001>

<llo_original>
// kernel: tpu_custom_call.1
$region0: #{tpu_custom_call.1}
  #allocation0 [shape = 'u32[]', space=smem, size = 0x4, offset = 0x4, fixed_abs, tag = 'smem constant byte address 0x4 - core index']
  #allocation1 [shape = 'u32[144,128]{1,0:T(1,128)}', space=vmem, size = 0x12000, scoped, tag = 'internal scratch']
  %s0 = inlined_call_operand.vmem [shape: f32[2,4,256], index: 0, kind: input, shape index: {}]
  %s1 = inlined_call_operand.vmem [shape: f32[160,4], index: 1, kind: input, shape index: {}]
  %s2 = inlined_call_operand.vmem [shape: f32[160,1], index: 2, kind: input, shape index: {}]
  %s3 = inlined_call_operand.vmem [shape: f32[2,80], index: 3, kind: input, shape index: {}]
  %s4 = inlined_call_operand.hbm [shape: f32[2,2,256], index: 4, kind: output, shape index: {}]
  %s5 = sld [smem:[#allocation0]]
  $region49: #{tpu_custom_call.1} parent=0
    _
  %s7 = ssub.s32 1, %s5
  %s8 = scalar_select 0, %s7, %s5
  $region1: #{tpu_custom_call.1} parent=0
    #allocation2 [shape = 'u8[4096]{0}', space=vmem, size = 0x1000, scoped, tag = 'output window, operand 0']
    #allocation3 [shape = 's32[2]{0}', space=sflag, size = 0x8, scoped, tag = 'scoped memory for tpu_custom_call.1']
    %9 = vsyncpa [#allocation3], 0
    %s10 = scalar_lea.sflag [#allocation3], 1
    %11 = vsyncpa %s10, 0
    loop: start=0, step=1, limit=4
    $region2: #{tpu_custom_call.1} parent=1 // loop_pre_header
      _
    $region3: #{tpu_custom_call.1} parent=1 // loop_header
      %s13 = sphi 0, %s17
      %p14 = scmp.ge.s32.totalorder %s13, 4
      %s20 = sphi 0, %s32
      %s21 = sphi 0, %s28
      %s22 = sphi 0, %s20
      %s23 = sphi 0, %s21
      %s24 = sphi 0, %s22
      %s25 = sphi 0, %s23
      %s37 = sphi 0, %s39
      %s40 = sphi 0, %s37
      %s41 = sphi 0, %s40
      %s57 = sphi 0, %s41
      %s61 = sphi 0, %s61
      %s63 = sphi 0, %s61
      %s64 = sphi 0, %s63
      %s78 = sphi 0, %s64
      %s82 = sphi 0, %s82
      %s84 = sphi 0, %s82
      %s85 = sphi 0, %s84
      %s99 = sphi 0, %s85
      %s103 = sphi 0, %s103
      %s105 = sphi 0, %s103
      %s106 = sphi 0, %s105
      %s120 = sphi 0, %s106
      %s128 = sphi 0, %s130
      %s131 = sphi 0, %s128
      %s132 = sphi 0, %s131
      %s148 = sphi 0, %s132
    $region4: #{tpu_custom_call.1} parent=1 // loop_header_branch
      %16 = sbr.rel (%p14) target = $region8
    $region5: #{tpu_custom_call.1} parent=1 // loop_body
      %s18 = ssub.s32 %s13, 1
      %s19 = ssub.s32 %s13, 2
      %s26 = sadd.s32 1, %s21
      %p27 = scmp.ge.s32.totalorder %s26, 1
      %s28 = scalar_select %p27, 0, %s26
      %s29 = sadd.s32 1, %s20
      %s30 = scalar_select %p27, %s29, %s20
      %p31 = scmp.ge.s32.totalorder %s30, 2
      %s32 = scalar_select %p31, 0, %s30
      %s33 = ssub.s32 %s20, %s32
      %s34 = ssub.s32 %s21, %s28
      %s35 = sor.u32 %s33, %s34
      %p36 = scmp.eq.s32.totalorder %s35, 0
      %s38 = sadd.s32 %s37, 1
      %s39 = scalar_select %p36, %s37, %s38
      %p42 = pneg %p36
      %p43 = scmp.eq.s32.totalorder %s13, 1
      %p44 = por %p42, %p43
      %p45 = scmp.ne.s32.totalorder %s37, %s40
      %p46 = scmp.eq.s32.totalorder %s13, 0
      %p47 = por %p45, %p46
      %p48 = scmp.ne.s32.totalorder %s37, %s40
      %p49 = scmp.eq.s32.totalorder %s18, 1
      %p50 = por %p48, %p49
      %p51 = scmp.ne.s32.totalorder %s40, %s41
      %p52 = scmp.eq.s32.totalorder %s18, 0
      %p53 = por %p51, %p52
      %p54 = scmp.ne.s32.totalorder %s40, %s41
      %p55 = scmp.eq.s32.totalorder %s19, 1
      %p56 = por %p54, %p55
      %p58 = scmp.ne.s32.totalorder %s41, %s57
      %p59 = scmp.eq.s32.totalorder %s19, 0
      %p60 = por %p58, %p59
      %s62 = sadd.s32 %s61, 1
      %p65 = scmp.eq.s32.totalorder %s13, 1
      %p66 = scmp.ne.s32.totalorder %s61, %s63
      %p67 = scmp.eq.s32.totalorder %s13, 0
      %p68 = por %p66, %p67
      %p69 = scmp.ne.s32.totalorder %s61, %s63
      %p70 = scmp.eq.s32.totalorder %s18, 1
      %p71 = por %p69, %p70
      %p72 = scmp.ne.s32.totalorder %s63, %s64
      %p73 = scmp.eq.s32.totalorder %s18, 0
      %p74 = por %p72, %p73
      %p75 = scmp.ne.s32.totalorder %s63, %s64
      %p76 = scmp.eq.s32.totalorder %s19, 1
      %p77 = por %p75, %p76
      %p79 = scmp.ne.s32.totalorder %s64, %s78
      %p80 = scmp.eq.s32.totalorder %s19, 0
      %p81 = por %p79, %p80
      %s83 = sadd.s32 %s82, 1
      %p86 = scmp.eq.s32.totalorder %s13, 1
      %p87 = scmp.ne.s32.totalorder %s82, %s84
      %p88 = scmp.eq.s32.totalorder %s13, 0
      %p89 = por %p87, %p88
      %p90 = scmp.ne.s32.totalorder %s82, %s84
      %p91 = scmp.eq.s32.totalorder %s18, 1
      %p92 = por %p90, %p91
      %p93 = scmp.ne.s32.totalorder %s84, %s85
      %p94 = scmp.eq.s32.totalorder %s18, 0
      %p95 = por %p93, %p94
      %p96 = scmp.ne.s32.totalorder %s84, %s85
      %p97 = scmp.eq.s32.totalorder %s19, 1
      %p98 = por %p96, %p97
      %p100 = scmp.ne.s32.totalorder %s85, %s99
      %p101 = scmp.eq.s32.totalorder %s19, 0
      %p102 = por %p100, %p101
      %s104 = sadd.s32 %s103, 1
      %p107 = scmp.eq.s32.totalorder %s13, 1
      %p108 = scmp.ne.s32.totalorder %s103, %s105
      %p109 = scmp.eq.s32.totalorder %s13, 0
      %p110 = por %p108, %p109
      %p111 = scmp.ne.s32.totalorder %s103, %s105
      %p112 = scmp.eq.s32.totalorder %s18, 1
      %p113 = por %p111, %p112
      %p114 = scmp.ne.s32.totalorder %s105, %s106
      %p115 = scmp.eq.s32.totalorder %s18, 0
      %p116 = por %p114, %p115
      %p117 = scmp.ne.s32.totalorder %s105, %s106
      %p118 = scmp.eq.s32.totalorder %s19, 1
      %p119 = por %p117, %p118
      %p121 = scmp.ne.s32.totalorder %s106, %s120
      %p122 = scmp.eq.s32.totalorder %s19, 0
      %p123 = por %p121, %p122
      %s124 = ssub.s32 %s20, %s32
      %s125 = ssub.s32 %s21, %s28
      %s126 = sor.u32 %s124, %s125
      %p127 = scmp.eq.s32.totalorder %s126, 0
      %s129 = sadd.s32 %s128, 1
      %s130 = scalar_select %p127, %s128, %s129
      %p133 = pneg %p127
      %p134 = scmp.eq.s32.totalorder %s13, 1
      %p135 = por %p133, %p134
      %p136 = scmp.ne.s32.totalorder %s128, %s131
      %p137 = scmp.eq.s32.totalorder %s13, 0
      %p138 = por %p136, %p137
      %p139 = scmp.ne.s32.totalorder %s128, %s131
      %p140 = scmp.eq.s32.totalorder %s18, 1
      %p141 = por %p139, %p140
      %p142 = scmp.ne.s32.totalorder %s131, %s132
      %p143 = scmp.eq.s32.totalorder %s18, 0
      %p144 = por %p142, %p143
      %p145 = scmp.ne.s32.totalorder %s131, %s132
      %p146 = scmp.eq.s32.totalorder %s19, 1
      %p147 = por %p145, %p146
      %p149 = scmp.ne.s32.totalorder %s132, %s148
      %p150 = scmp.eq.s32.totalorder %s19, 0
      %p151 = por %p149, %p150
      %p152 = scmp.le.s32.totalorder 1, %s13
      %p153 = scmp.lt.s32.totalorder %s13, 3
      %p154 = pnand %p152, %p153
      %p155 = pneg %p154
      // Predicated region
      $region9: #{tpu_custom_call.1} parent=5 // pred_check
        _
      $region10: #{tpu_custom_call.1} parent=5 // pred_check_branch
        %157 = sbr.rel (%p154) target = $region12
      $region11: #{tpu_custom_call.1} parent=5 // pred_region
        %s158 = ssub.s32 %s13, 1
        // Predicated region
        $region13: #{tpu_custom_call.1} parent=11 // pred_check
          %p159 = pneg %p74
        $region14: #{tpu_custom_call.1} parent=11 // pred_check_branch
          %161 = sbr.rel (%p159) target = $region16
        $region15: #{tpu_custom_call.1} parent=11 // pred_region
          _
        $region16: #{tpu_custom_call.1} parent=11 // pred_fallthru
          _
        // Predicated region
        $region17: #{tpu_custom_call.1} parent=11 // pred_check
          %p162 = pneg %p95
        $region18: #{tpu_custom_call.1} parent=11 // pred_check_branch
          %164 = sbr.rel (%p162) target = $region20
        $region19: #{tpu_custom_call.1} parent=11 // pred_region
          _
        $region20: #{tpu_custom_call.1} parent=11 // pred_fallthru
          _
        // Predicated region
        $region21: #{tpu_custom_call.1} parent=11 // pred_check
          %p165 = pneg %p116
        $region22: #{tpu_custom_call.1} parent=11 // pred_check_branch
          %167 = sbr.rel (%p165) target = $region24
        $region23: #{tpu_custom_call.1} parent=11 // pred_region
          _
        $region24: #{tpu_custom_call.1} parent=11 // pred_fallthru
          _
      $region12: #{tpu_custom_call.1} parent=5 // pred_fallthru
        _
      %p168 = scmp.lt.s32.totalorder %s13, 2
      // Predicated region
      $region25: #{tpu_custom_call.1} parent=5 // pred_check
        %p169 = pneg %p168
      $region26: #{tpu_custom_call.1} parent=5 // pred_check_branch
        %171 = sbr.rel (%p169) target = $region28
      $region27: #{tpu_custom_call.1} parent=5 // pred_region
        // Predicated region
        $region29: #{tpu_custom_call.1} parent=27 // pred_check
          %p172 = pneg %p47
        $region30: #{tpu_custom_call.1} parent=27 // pred_check_branch
          %174 = sbr.rel (%p172) target = $region32
        $region31: #{tpu_custom_call.1} parent=27 // pred_region
          %s175 = smul.u32 2, %s21
          %p176 = scmp.lt.s32.totalorder %s20, 1
          %s177 = scalar_select %p176, %s20, 1
          %p178 = scmp.lt.s32.totalorder %s175, 1
          %s179 = scalar_select %p178, %s175, 1
          %s180 = smul.addr %s177, 2
          %s181 = sadd.s32 %s179, %s180
          %s182 = smul.addr %s181, 4
          %s183 = scalar_lea.vmem %s0, %s182
          %s184 = smul.u32 2, %s21
        $region32: #{tpu_custom_call.1} parent=27 // pred_fallthru
          _
      $region28: #{tpu_custom_call.1} parent=5 // pred_fallthru
        _
      %p185 = scmp.le.s32.totalorder 1, %s13
      %p186 = scmp.lt.s32.totalorder %s13, 3
      %p187 = pnand %p185, %p186
      %p188 = pneg %p187
      // Predicated region
      $region33: #{tpu_custom_call.1} parent=5 // pred_check
        _
      $region34: #{tpu_custom_call.1} parent=5 // pred_check_branch
        %190 = sbr.rel (%p187) target = $region36
      $region35: #{tpu_custom_call.1} parent=5 // pred_region
        %s191 = ssub.s32 %s13, 1
        %s192 = smul.u32 2, %s23
        %p193 = scmp.lt.s32.totalorder %s22, 1
        %s194 = scalar_select %p193, %s22, 1
        %p195 = scmp.lt.s32.totalorder %s192, 1
        %s196 = scalar_select %p195, %s192, 1
        %s197 = smul.addr %s194, 2
        %s198 = sadd.s32 %s196, %s197
        %s199 = smul.addr %s198, 4
        %s200 = scalar_lea.vmem %s0, %s199
        %p201 = pneg %p53
        %p202 = pneg %p50
        %p203 = pneg %p74
        %p204 = pneg %p71
        %p205 = pneg %p95
        %p206 = pneg %p92
        %p207 = pneg %p116
        %p208 = pneg %p113
        %p209 = pneg %p144
        %p210 = pneg %p141
        %s211 = sand.u32 %s131, 1
        %s212 = scalar_lea.sflag [#allocation3], %s211
        %s213 = sand.u32 %s131, 1
        %s214 = smul.addr %s213, 4
        %s215 = scalar_lea.vmem [#allocation2], %s214
        %s216 = smul.u32 2, %s23
        %p217 = scmp.lt.s32.totalorder %s22, 1
        %s218 = scalar_select %p217, %s22, 1
        %p219 = scmp.lt.s32.totalorder %s216, 1
        %s220 = scalar_select %p219, %s216, 1
        %s221 = smul.addr %s218, 2
        %s222 = sadd.s32 %s220, %s221
        %s223 = smul.addr %s222, 4
        %s224 = scalar_lea.vmem %s0, %s223
        %s225 = smul.u32 2, %s23
        %s226 = smul.u32 2, %s23
        %v227 = vld [vmem:[%s224] sm:$0xff]
        %v228 = vld [vmem:[%s3] sm:$0x3]
        %v229 = vld [vmem:[%s1] sm:$0xff]
        %v230 = vld [vmem:[%s1 + $0x8] sm:$0xff]
        %v231 = vld [vmem:[%s1 + $0x10] sm:$0xff]
        %v232 = vld [vmem:[%s1 + $0x18] sm:$0xff]
        %v233 = vld [vmem:[%s1 + $0x20] sm:$0xff]
        %v234 = vld [vmem:[%s1 + $0x28] sm:$0xff]
        %v235 = vld [vmem:[%s1 + $0x30] sm:$0xff]
        %v236 = vld [vmem:[%s1 + $0x38] sm:$0xff]
        %v237 = vld [vmem:[%s1 + $0x40] sm:$0xff]
        %v238 = vld [vmem:[%s1 + $0x48] sm:$0xff]
        %v239 = vld [vmem:[%s2] sm:$0xff]
        %v240 = vld [vmem:[%s2 + $0x8] sm:$0xff]
        %v241 = vld [vmem:[%s2 + $0x10] sm:$0xff]
        %v242 = vld [vmem:[%s2 + $0x18] sm:$0xff]
        %v243 = vld [vmem:[%s2 + $0x20] sm:$0xff]
        %v244 = vld [vmem:[%s2 + $0x28] sm:$0xff]
        %v245 = vld [vmem:[%s2 + $0x30] sm:$0xff]
        %v246 = vld [vmem:[%s2 + $0x38] sm:$0xff]
        %v247 = vld [vmem:[%s2 + $0x40] sm:$0xff]
        %v248 = vld [vmem:[%s2 + $0x48] sm:$0xff]
        %250 = vset.pattern.permute.xlu0 0
        %251 = vperm.xlu0 %250, %v239
        %v252 = vpop.permute.xlu0 %251
        %255 = vset.pattern.permute.xlu0 0
        %256 = vperm.xlu0 %255, %v240
        %v257 = vpop.permute.xlu0 %256
        %260 = vset.pattern.permute.xlu0 0
        %261 = vperm.xlu0 %260, %v241
        %v262 = vpop.permute.xlu0 %261
        %265 = vset.pattern.permute.xlu0 0
        %266 = vperm.xlu0 %265, %v242
        %v267 = vpop.permute.xlu0 %266
        %270 = vset.pattern.permute.xlu0 0
        %271 = vperm.xlu0 %270, %v243
        %v272 = vpop.permute.xlu0 %271
        %275 = vset.pattern.permute.xlu0 0
        %276 = vperm.xlu0 %275, %v244
        %v277 = vpop.permute.xlu0 %276
        %280 = vset.pattern.permute.xlu0 0
        %281 = vperm.xlu0 %280, %v245
        %v282 = vpop.permute.xlu0 %281
        %285 = vset.pattern.permute.xlu0 0
        %286 = vperm.xlu0 %285, %v246
        %v287 = vpop.permute.xlu0 %286
        %290 = vset.pattern.permute.xlu0 0
        %291 = vperm.xlu0 %290, %v247
        %v292 = vpop.permute.xlu0 %291
        %295 = vset.pattern.permute.xlu0 0
        %296 = vperm.xlu0 %295, %v248
        %v297 = vpop.permute.xlu0 %296
        %v300 = vcombine.high %v227, %v227
        %vm301 = vcmask 31744
        %v303 = vsel %vm301, %v229, 0
        %v306 = vsel %vm301, %v230, 0
        %v309 = vsel %vm301, %v231, 0
        %v312 = vsel %vm301, %v232, 0
        %v315 = vsel %vm301, %v233, 0
        %v318 = vsel %vm301, %v234, 0
        %v321 = vsel %vm301, %v235, 0
        %v324 = vsel %vm301, %v236, 0
        %v327 = vsel %vm301, %v237, 0
        %v330 = vsel %vm301, %v238, 0
        %vm332 = vcmask 1043456
        %v333 = vsel %vm332, %v227, 0
        %v335 = vsel %vm332, %v300, 0
        %337 = vmatprep.subr.mxu0 0.0
        %338 = vmatpush1.msra.mxu0 0.0
        %339 = vmatprep.subr.mxu0 0.0
        %340 = vmatpush1.msra.mxu0 0.0
        %341 = vmatprep.subr.mxu0 0.0
        %342 = vmatpush1.msra.mxu0 0.0
        %343 = vmatprep.subr.mxu0 0.0
        %344 = vmatpush1.msra.mxu0 0.0
        %345 = vmatprep.subr.mxu0 0.0
        %346 = vmatpush1.msra.mxu0 0.0
        %347 = vmatprep.subr.mxu0 0.0
        %348 = vmatpush1.msra.mxu0 0.0
        %349 = vmatprep.subr.mxu0 0.0
        %350 = vmatpush1.msra.mxu0 0.0
        %351 = vmatprep.subr.mxu0 0.0
        %352 = vmatpush1.msra.mxu0 0.0
        %353 = vmatprep.subr.mxu0 0.0
        %354 = vmatpush1.msra.mxu0 0.0
        %355 = vmatprep.subr.mxu0 0.0
        %356 = vmatpush1.msra.mxu0 0.0
        %357 = vmatprep.subr.mxu0 0.0
        %358 = vmatpush1.msra.mxu0 0.0
        %359 = vmatprep.subr.mxu0 0.0
        %360 = vmatpush1.msra.mxu0 0.0
        %361 = vmatprep.subr.mxu0 0.0
        %362 = vmatpush1.msra.mxu0 0.0
        %363 = vmatprep.subr.mxu0 0.0
        %364 = vmatpush1.msra.mxu0 0.0
        %365 = vmatprep.subr.mxu0 0.0
        %366 = vmatpush1.msra.mxu0 0.0
        %367 = vmatprep.subr.mxu0 %v335
        %368 = vmatpush1.msra.mxu0 %v333
        %369 = vmatprep.subr.mxu0 0.0
        %370 = vmatpush2.msra.mxu0 0.0
        %371 = vmatprep.subr.mxu0 0.0
        %372 = vmatpush2.msra.mxu0 0.0
        %373 = vmatprep.subr.mxu0 0.0
        %374 = vmatpush2.msra.mxu0 0.0
        %375 = vmatprep.subr.mxu0 0.0
        %376 = vmatpush2.msra.mxu0 0.0
        %377 = vmatprep.subr.mxu0 0.0
        %378 = vmatpush2.msra.mxu0 0.0
        %379 = vmatprep.subr.mxu0 0.0
        %380 = vmatpush2.msra.mxu0 0.0
        %381 = vmatprep.subr.mxu0 0.0
        %382 = vmatpush2.msra.mxu0 0.0
        %383 = vmatprep.subr.mxu0 0.0
        %384 = vmatpush2.msra.mxu0 0.0
        %385 = vmatprep.subr.mxu0 0.0
        %386 = vmatpush2.msra.mxu0 0.0
        %387 = vmatprep.subr.mxu0 0.0
        %388 = vmatpush2.msra.mxu0 0.0
        %389 = vmatprep.subr.mxu0 0.0
        %390 = vmatpush2.msra.mxu0 0.0
        %391 = vmatprep.subr.mxu0 0.0
        %392 = vmatpush2.msra.mxu0 0.0
        %393 = vmatprep.subr.mxu0 0.0
        %394 = vmatpush2.msra.mxu0 0.0
        %395 = vmatprep.subr.mxu0 0.0
        %396 = vmatpush2.msra.mxu0 0.0
        %397 = vmatprep.subr.mxu0 0.0
        %398 = vmatpush2.msra.mxu0 0.0
        %399 = vmatprep.subr.mxu0 0.0
        %400 = vmatpush2.msra.mxu0 0.0
        %401 = vmatprep.mubr.f32.mxu0 0.0
        %402 = vmatmul.mubr.f32.gmra.mxu0 %v303
        %v403 = vpop.f32.mrf.mxu0
        %v404 = vadd.f32 %v252, %v403
        %v405 = vpop.f32.mrf.mxu0
        %v406 = vadd.f32 %v252, %v405
        %407 = vmatprep.mubr.f32.mxu0 0.0
        %408 = vmatmul.mubr.f32.gmra.mxu0 %v306
        %v409 = vpop.f32.mrf.mxu0
        %v410 = vadd.f32 %v257, %v409
        %v411 = vpop.f32.mrf.mxu0
        %v412 = vadd.f32 %v257, %v411
        %413 = vmatprep.mubr.f32.mxu0 0.0
        %414 = vmatmul.mubr.f32.gmra.mxu0 %v309
        %v415 = vpop.f32.mrf.mxu0
        %v416 = vadd.f32 %v262, %v415
        %v417 = vpop.f32.mrf.mxu0
        %v418 = vadd.f32 %v262, %v417
        %419 = vmatprep.mubr.f32.mxu0 0.0
        %420 = vmatmul.mubr.f32.gmra.mxu0 %v312
        %v421 = vpop.f32.mrf.mxu0
        %v422 = vadd.f32 %v267, %v421
        %v423 = vpop.f32.mrf.mxu0
        %v424 = vadd.f32 %v267, %v423
        %425 = vmatprep.mubr.f32.mxu0 0.0
        %426 = vmatmul.mubr.f32.gmra.mxu0 %v315
        %v427 = vpop.f32.mrf.mxu0
        %v428 = vadd.f32 %v272, %v427
        %v429 = vpop.f32.mrf.mxu0
        %v430 = vadd.f32 %v272, %v429
        %431 = vmatprep.mubr.f32.mxu0 0.0
        %432 = vmatmul.mubr.f32.gmra.mxu0 %v318
        %v433 = vpop.f32.mrf.mxu0
        %v434 = vadd.f32 %v277, %v433
        %v435 = vpop.f32.mrf.mxu0
        %v436 = vadd.f32 %v277, %v435
        %437 = vmatprep.mubr.f32.mxu0 0.0
        %438 = vmatmul.mubr.f32.gmra.mxu0 %v321
        %v439 = vpop.f32.mrf.mxu0
        %v440 = vadd.f32 %v282, %v439
        %v441 = vpop.f32.mrf.mxu0
        %v442 = vadd.f32 %v282, %v441
        %443 = vmatprep.mubr.f32.mxu0 0.0
        %444 = vmatmul.mubr.f32.gmra.mxu0 %v324
        %v445 = vpop.f32.mrf.mxu0
        %v446 = vadd.f32 %v287, %v445
        %v447 = vpop.f32.mrf.mxu0
        %v448 = vadd.f32 %v287, %v447
        %449 = vmatprep.mubr.f32.mxu0 0.0
        %450 = vmatmul.mubr.f32.gmra.mxu0 %v327
        %v451 = vpop.f32.mrf.mxu0
        %v452 = vadd.f32 %v292, %v451
        %v453 = vpop.f32.mrf.mxu0
        %v454 = vadd.f32 %v292, %v453
        %455 = vmatprep.mubr.f32.mxu0 0.0
        %456 = vmatmul.mubr.f32.gmra.mxu0 %v330
        %v457 = vpop.f32.mrf.mxu0
        %v458 = vadd.f32 %v297, %v457
        %v459 = vpop.f32.mrf.mxu0
        %v460 = vadd.f32 %v297, %v459
        %461 = vdwg.mxu0
        %v462 = vmax.f32 %v404, %v416
        %v463 = vmax.f32 %v410, %v422
        %v464 = vmax.f32 %v462, %v428
        %v465 = vmax.f32 %v463, %v434
        %v466 = vmax.f32 %v464, %v440
        %v467 = vmax.f32 %v465, %v446
        %v468 = vmax.f32 %v466, %v452
        %v469 = vmax.f32 %v467, %v458
        %v470 = vmax.f32 %v468, %v469
        %v471 = vrot.slane %v470, 4
        %v472 = vmax.f32 %v470, %v471
        %v473 = vrot.slane %v472, 2
        %v474 = vmax.f32 %v472, %v473
        %v475 = vrot.slane %v474, 1
        %v476 = vmax.f32 %v474, %v475
        %v477 = vmax.f32 %v406, %v418
        %v478 = vmax.f32 %v412, %v424
        %v479 = vmax.f32 %v477, %v430
        %v480 = vmax.f32 %v478, %v436
        %v481 = vmax.f32 %v479, %v442
        %v482 = vmax.f32 %v480, %v448
        %v483 = vmax.f32 %v481, %v454
        %v484 = vmax.f32 %v482, %v460
        %v485 = vmax.f32 %v483, %v484
        %v486 = vrot.slane %v485, 4
        %v487 = vmax.f32 %v485, %v486
        %v488 = vrot.slane %v487, 2
        %v489 = vmax.f32 %v487, %v488
        %v490 = vrot.slane %v489, 1
        %v491 = vmax.f32 %v489, %v490
        %v492 = vsub.f32 %v404, %v476
        %v493 = vsub.f32 %v406, %v491
        %v494 = vsub.f32 %v410, %v476
        %v495 = vsub.f32 %v412, %v491
        %v496 = vsub.f32 %v416, %v476
        %v497 = vsub.f32 %v418, %v491
        %v498 = vsub.f32 %v422, %v476
        %v499 = vsub.f32 %v424, %v491
        %v500 = vsub.f32 %v428, %v476
        %v501 = vsub.f32 %v430, %v491
        %v502 = vsub.f32 %v434, %v476
        %v503 = vsub.f32 %v436, %v491
        %v504 = vsub.f32 %v440, %v476
        %v505 = vsub.f32 %v442, %v491
        %v506 = vsub.f32 %v446, %v476
        %v507 = vsub.f32 %v448, %v491
        %v508 = vsub.f32 %v452, %v476
        %v509 = vsub.f32 %v454, %v491
        %v510 = vsub.f32 %v458, %v476
        %v511 = vsub.f32 %v460, %v491
        %v512 = vmul.f32 %v492, 1.442695
        %v513 = vpow.pop %v512
        %v514 = vmul.f32 %v493, 1.442695
        %v515 = vpow.pop %v514
        %v516 = vmul.f32 %v494, 1.442695
        %v517 = vpow.pop %v516
        %v518 = vmul.f32 %v495, 1.442695
        %v519 = vpow.pop %v518
        %v520 = vmul.f32 %v496, 1.442695
        %v521 = vpow.pop %v520
        %v522 = vmul.f32 %v497, 1.442695
        %v523 = vpow.pop %v522
        %v524 = vmul.f32 %v498, 1.442695
        %v525 = vpow.pop %v524
        %v526 = vmul.f32 %v499, 1.442695
        %v527 = vpow.pop %v526
        %v528 = vmul.f32 %v500, 1.442695
        %v529 = vpow.pop %v528
        %v530 = vmul.f32 %v501, 1.442695
        %v531 = vpow.pop %v530
        %v532 = vmul.f32 %v502, 1.442695
        %v533 = vpow.pop %v532
        %v534 = vmul.f32 %v503, 1.442695
        %v535 = vpow.pop %v534
        %v536 = vmul.f32 %v504, 1.442695
        %v537 = vpow.pop %v536
        %v538 = vmul.f32 %v505, 1.442695
        %v539 = vpow.pop %v538
        %v540 = vmul.f32 %v506, 1.442695
        %v541 = vpow.pop %v540
        %v542 = vmul.f32 %v507, 1.442695
        %v543 = vpow.pop %v542
        %v544 = vmul.f32 %v508, 1.442695
        %v545 = vpow.pop %v544
        %v546 = vmul.f32 %v509, 1.442695
        %v547 = vpow.pop %v546
        %v548 = vmul.f32 %v510, 1.442695
        %v549 = vpow.pop %v548
        %v550 = vmul.f32 %v511, 1.442695
        %v551 = vpow.pop %v550
        %vm552 = vcmask 654336
        %v554 = vsel %vm552, %v228, 0
        %556 = vmatprep.subr.mxu0 0.0
        %557 = vmatpush1.msra.mxu0 0.0
        %558 = vmatprep.subr.mxu0 0.0
        %559 = vmatpush1.msra.mxu0 0.0
        %560 = vmatprep.subr.mxu0 0.0
        %561 = vmatpush1.msra.mxu0 0.0
        %562 = vmatprep.subr.mxu0 0.0
        %563 = vmatpush1.msra.mxu0 0.0
        %564 = vmatprep.subr.mxu0 0.0
        %565 = vmatpush1.msra.mxu0 0.0
        %566 = vmatprep.subr.mxu0 0.0
        %567 = vmatpush1.msra.mxu0 0.0
        %568 = vmatprep.subr.mxu0 %v551
        %569 = vmatpush1.msra.mxu0 %v549
        %570 = vmatprep.subr.mxu0 %v547
        %571 = vmatpush1.msra.mxu0 %v545
        %572 = vmatprep.subr.mxu0 %v543
        %573 = vmatpush1.msra.mxu0 %v541
        %574 = vmatprep.subr.mxu0 %v539
        %575 = vmatpush1.msra.mxu0 %v537
        %576 = vmatprep.subr.mxu0 %v535
        %577 = vmatpush1.msra.mxu0 %v533
        %578 = vmatprep.subr.mxu0 %v531
        %579 = vmatpush1.msra.mxu0 %v529
        %580 = vmatprep.subr.mxu0 %v527
        %581 = vmatpush1.msra.mxu0 %v525
        %582 = vmatprep.subr.mxu0 %v523
        %583 = vmatpush1.msra.mxu0 %v521
        %584 = vmatprep.subr.mxu0 %v519
        %585 = vmatpush1.msra.mxu0 %v517
        %586 = vmatprep.subr.mxu0 %v515
        %587 = vmatpush1.msra.mxu0 %v513
        %588 = vmatprep.subr.mxu0 0.0
        %589 = vmatpush2.msra.mxu0 0.0
        %590 = vmatprep.subr.mxu0 0.0
        %591 = vmatpush2.msra.mxu0 0.0
        %592 = vmatprep.subr.mxu0 0.0
        %593 = vmatpush2.msra.mxu0 0.0
        %594 = vmatprep.subr.mxu0 0.0
        %595 = vmatpush2.msra.mxu0 0.0
        %596 = vmatprep.subr.mxu0 0.0
        %597 = vmatpush2.msra.mxu0 0.0
        %598 = vmatprep.subr.mxu0 0.0
        %599 = vmatpush2.msra.mxu0 0.0
        %600 = vmatprep.subr.mxu0 0.0
        %601 = vmatpush2.msra.mxu0 0.0
        %602 = vmatprep.subr.mxu0 0.0
        %603 = vmatpush2.msra.mxu0 0.0
        %604 = vmatprep.subr.mxu0 0.0
        %605 = vmatpush2.msra.mxu0 0.0
        %606 = vmatprep.subr.mxu0 0.0
        %607 = vmatpush2.msra.mxu0 0.0
        %608 = vmatprep.subr.mxu0 0.0
        %609 = vmatpush2.msra.mxu0 0.0
        %610 = vmatprep.subr.mxu0 0.0
        %611 = vmatpush2.msra.mxu0 0.0
        %612 = vmatprep.subr.mxu0 0.0
        %613 = vmatpush2.msra.mxu0 0.0
        %614 = vmatprep.subr.mxu0 0.0
        %615 = vmatpush2.msra.mxu0 0.0
        %616 = vmatprep.subr.mxu0 0.0
        %617 = vmatpush2.msra.mxu0 0.0
        %618 = vmatprep.subr.mxu0 0.0
        %619 = vmatpush2.msra.mxu0 0.0
        %620 = vmatprep.mubr.f32.mxu0 0.0
        %621 = vmatmul.mubr.f32.gmra.mxu0 %v554
        %v622 = vpop.f32.mrf.mxu0
        %v623 = vadd.f32 0.0, %v622
        %v624 = vpop.f32.mrf.mxu0
        %v625 = vadd.f32 0.0, %v624
        %626 = vdwg.mxu0
        %v629 = vrot.slane %v623, 1
        %v630 = vrot.slane %v625, 1
        %v633 = vrcp.pop %v629
        %v634 = vmul.f32 %v623, %v633
        %v635 = vrcp.pop %v630
        %v636 = vmul.f32 %v625, %v635
        %v639 = vcombine.low %v634, %v636
        %v641 = vunpack.c.l.s4 1966171168
        %v642 = vunpack.c.0.s8 %v641
        %v643 = vlaneseq
        %v644 = vshrl.u32 %v643, 7
        %v645 = vsub.s32 %v642, %v644
        %v646 = vrot.slane %v639, %v645
        %v648 = vunpack.c.l.s4 1966171168
        %v649 = vunpack.c.0.s8 %v648
        %v650 = vlaneseq
        %v651 = vshrl.u32 %v650, 7
        %v652 = vsub.s32 %v649, %v651
        %v653 = vrot.slane %v646, %v652
        %v655 = vlaneseq
        %vm656 = vcmp.ge.s32.totalorder %v655, 0
        %vm657 = vcmp.lt.s32.totalorder %v655, 256
        %vm658 = vmand %vm656, %vm657
        %659 = vst.msk [vmem:[%s215] ss:$2 sm:$0x3] %vm658, %v653
        %v660 = vld [vmem:[%s1 + $0x50] sm:$0xff]
        %v661 = vld [vmem:[%s1 + $0x58] sm:$0xff]
        %v662 = vld [vmem:[%s1 + $0x60] sm:$0xff]
        %v663 = vld [vmem:[%s1 + $0x68] sm:$0xff]
        %v664 = vld [vmem:[%s1 + $0x70] sm:$0xff]
        %v665 = vld [vmem:[%s1 + $0x78] sm:$0xff]
        %v666 = vld [vmem:[%s1 + $0x80] sm:$0xff]
        %v667 = vld [vmem:[%s1 + $0x88] sm:$0xff]
        %v668 = vld [vmem:[%s1 + $0x90] sm:$0xff]
        %v669 = vld [vmem:[%s1 + $0x98] sm:$0xff]
        %v670 = vld [vmem:[%s2 + $0x50] sm:$0xff]
        %v671 = vld [vmem:[%s2 + $0x58] sm:$0xff]
        %v672 = vld [vmem:[%s2 + $0x60] sm:$0xff]
        %v673 = vld [vmem:[%s2 + $0x68] sm:$0xff]
        %v674 = vld [vmem:[%s2 + $0x70] sm:$0xff]
        %v675 = vld [vmem:[%s2 + $0x78] sm:$0xff]
        %v676 = vld [vmem:[%s2 + $0x80] sm:$0xff]
        %v677 = vld [vmem:[%s2 + $0x88] sm:$0xff]
        %v678 = vld [vmem:[%s2 + $0x90] sm:$0xff]
        %v679 = vld [vmem:[%s2 + $0x98] sm:$0xff]
        %681 = vset.pattern.permute.xlu0 0
        %682 = vperm.xlu0 %681, %v670
        %v683 = vpop.permute.xlu0 %682
        %686 = vset.pattern.permute.xlu0 0
        %687 = vperm.xlu0 %686, %v671
        %v688 = vpop.permute.xlu0 %687
        %691 = vset.pattern.permute.xlu0 0
        %692 = vperm.xlu0 %691, %v672
        %v693 = vpop.permute.xlu0 %692
        %696 = vset.pattern.permute.xlu0 0
        %697 = vperm.xlu0 %696, %v673
        %v698 = vpop.permute.xlu0 %697
        %701 = vset.pattern.permute.xlu0 0
        %702 = vperm.xlu0 %701, %v674
        %v703 = vpop.permute.xlu0 %702
        %706 = vset.pattern.permute.xlu0 0
        %707 = vperm.xlu0 %706, %v675
        %v708 = vpop.permute.xlu0 %707
        %711 = vset.pattern.permute.xlu0 0
        %712 = vperm.xlu0 %711, %v676
        %v713 = vpop.permute.xlu0 %712
        %716 = vset.pattern.permute.xlu0 0
        %717 = vperm.xlu0 %716, %v677
        %v718 = vpop.permute.xlu0 %717
        %721 = vset.pattern.permute.xlu0 0
        %722 = vperm.xlu0 %721, %v678
        %v723 = vpop.permute.xlu0 %722
        %726 = vset.pattern.permute.xlu0 0
        %727 = vperm.xlu0 %726, %v679
        %v728 = vpop.permute.xlu0 %727
        %v731 = vsel %vm301, %v660, 0
        %v734 = vsel %vm301, %v661, 0
        %v737 = vsel %vm301, %v662, 0
        %v740 = vsel %vm301, %v663, 0
        %v743 = vsel %vm301, %v664, 0
        %v746 = vsel %vm301, %v665, 0
        %v749 = vsel %vm301, %v666, 0
        %v752 = vsel %vm301, %v667, 0
        %v755 = vsel %vm301, %v668, 0
        %v758 = vsel %vm301, %v669, 0
        %760 = vmatprep.subr.mxu0 0.0
        %761 = vmatpush1.msra.mxu0 0.0
        %762 = vmatprep.subr.mxu0 0.0
        %763 = vmatpush1.msra.mxu0 0.0
        %764 = vmatprep.subr.mxu0 0.0
        %765 = vmatpush1.msra.mxu0 0.0
        %766 = vmatprep.subr.mxu0 0.0
        %767 = vmatpush1.msra.mxu0 0.0
        %768 = vmatprep.subr.mxu0 0.0
        %769 = vmatpush1.msra.mxu0 0.0
        %770 = vmatprep.subr.mxu0 0.0
        %771 = vmatpush1.msra.mxu0 0.0
        %772 = vmatprep.subr.mxu0 0.0
        %773 = vmatpush1.msra.mxu0 0.0
        %774 = vmatprep.subr.mxu0 0.0
        %775 = vmatpush1.msra.mxu0 0.0
        %776 = vmatprep.subr.mxu0 0.0
        %777 = vmatpush1.msra.mxu0 0.0
        %778 = vmatprep.subr.mxu0 0.0
        %779 = vmatpush1.msra.mxu0 0.0
        %780 = vmatprep.subr.mxu0 0.0
        %781 = vmatpush1.msra.mxu0 0.0
        %782 = vmatprep.subr.mxu0 0.0
        %783 = vmatpush1.msra.mxu0 0.0
        %784 = vmatprep.subr.mxu0 0.0
        %785 = vmatpush1.msra.mxu0 0.0
        %786 = vmatprep.subr.mxu0 0.0
        %787 = vmatpush1.msra.mxu0 0.0
        %788 = vmatprep.subr.mxu0 0.0
        %789 = vmatpush1.msra.mxu0 0.0
        %790 = vmatprep.subr.mxu0 %v335
        %791 = vmatpush1.msra.mxu0 %v333
        %792 = vmatprep.subr.mxu0 0.0
        %793 = vmatpush2.msra.mxu0 0.0
        %794 = vmatprep.subr.mxu0 0.0
        %795 = vmatpush2.msra.mxu0 0.0
        %796 = vmatprep.subr.mxu0 0.0
        %797 = vmatpush2.msra.mxu0 0.0
        %798 = vmatprep.subr.mxu0 0.0
        %799 = vmatpush2.msra.mxu0 0.0
        %800 = vmatprep.subr.mxu0 0.0
        %801 = vmatpush2.msra.mxu0 0.0
        %802 = vmatprep.subr.mxu0 0.0
        %803 = vmatpush2.msra.mxu0 0.0
        %804 = vmatprep.subr.mxu0 0.0
        %805 = vmatpush2.msra.mxu0 0.0
        %806 = vmatprep.subr.mxu0 0.0
        %807 = vmatpush2.msra.mxu0 0.0
        %808 = vmatprep.subr.mxu0 0.0
        %809 = vmatpush2.msra.mxu0 0.0
        %810 = vmatprep.subr.mxu0 0.0
        %811 = vmatpush2.msra.mxu0 0.0
        %812 = vmatprep.subr.mxu0 0.0
        %813 = vmatpush2.msra.mxu0 0.0
        %814 = vmatprep.subr.mxu0 0.0
        %815 = vmatpush2.msra.mxu0 0.0
        %816 = vmatprep.subr.mxu0 0.0
        %817 = vmatpush2.msra.mxu0 0.0
        %818 = vmatprep.subr.mxu0 0.0
        %819 = vmatpush2.msra.mxu0 0.0
        %820 = vmatprep.subr.mxu0 0.0
        %821 = vmatpush2.msra.mxu0 0.0
        %822 = vmatprep.subr.mxu0 0.0
        %823 = vmatpush2.msra.mxu0 0.0
        %824 = vmatprep.mubr.f32.mxu0 0.0
        %825 = vmatmul.mubr.f32.gmra.mxu0 %v731
        %v826 = vpop.f32.mrf.mxu0
        %v827 = vadd.f32 %v683, %v826
        %v828 = vpop.f32.mrf.mxu0
        %v829 = vadd.f32 %v683, %v828
        %830 = vmatprep.mubr.f32.mxu0 0.0
        %831 = vmatmul.mubr.f32.gmra.mxu0 %v734
        %v832 = vpop.f32.mrf.mxu0
        %v833 = vadd.f32 %v688, %v832
        %v834 = vpop.f32.mrf.mxu0
        %v835 = vadd.f32 %v688, %v834
        %836 = vmatprep.mubr.f32.mxu0 0.0
        %837 = vmatmul.mubr.f32.gmra.mxu0 %v737
        %v838 = vpop.f32.mrf.mxu0
        %v839 = vadd.f32 %v693, %v838
        %v840 = vpop.f32.mrf.mxu0
        %v841 = vadd.f32 %v693, %v840
        %842 = vmatprep.mubr.f32.mxu0 0.0
        %843 = vmatmul.mubr.f32.gmra.mxu0 %v740
        %v844 = vpop.f32.mrf.mxu0
        %v845 = vadd.f32 %v698, %v844
        %v846 = vpop.f32.mrf.mxu0
        %v847 = vadd.f32 %v698, %v846
        %848 = vmatprep.mubr.f32.mxu0 0.0
        %849 = vmatmul.mubr.f32.gmra.mxu0 %v743
        %v850 = vpop.f32.mrf.mxu0
        %v851 = vadd.f32 %v703, %v850
        %v852 = vpop.f32.mrf.mxu0
        %v853 = vadd.f32 %v703, %v852
        %854 = vmatprep.mubr.f32.mxu0 0.0
        %855 = vmatmul.mubr.f32.gmra.mxu0 %v746
        %v856 = vpop.f32.mrf.mxu0
        %v857 = vadd.f32 %v708, %v856
        %v858 = vpop.f32.mrf.mxu0
        %v859 = vadd.f32 %v708, %v858
        %860 = vmatprep.mubr.f32.mxu0 0.0
        %861 = vmatmul.mubr.f32.gmra.mxu0 %v749
        %v862 = vpop.f32.mrf.mxu0
        %v863 = vadd.f32 %v713, %v862
        %v864 = vpop.f32.mrf.mxu0
        %v865 = vadd.f32 %v713, %v864
        %866 = vmatprep.mubr.f32.mxu0 0.0
        %867 = vmatmul.mubr.f32.gmra.mxu0 %v752
        %v868 = vpop.f32.mrf.mxu0
        %v869 = vadd.f32 %v718, %v868
        %v870 = vpop.f32.mrf.mxu0
        %v871 = vadd.f32 %v718, %v870
        %872 = vmatprep.mubr.f32.mxu0 0.0
        %873 = vmatmul.mubr.f32.gmra.mxu0 %v755
        %v874 = vpop.f32.mrf.mxu0
        %v875 = vadd.f32 %v723, %v874
        %v876 = vpop.f32.mrf.mxu0
        %v877 = vadd.f32 %v723, %v876
        %878 = vmatprep.mubr.f32.mxu0 0.0
        %879 = vmatmul.mubr.f32.gmra.mxu0 %v758
        %v880 = vpop.f32.mrf.mxu0
        %v881 = vadd.f32 %v728, %v880
        %v882 = vpop.f32.mrf.mxu0
        %v883 = vadd.f32 %v728, %v882
        %884 = vdwg.mxu0
        %v885 = vmax.f32 %v827, %v839
        %v886 = vmax.f32 %v833, %v845
        %v887 = vmax.f32 %v885, %v851
        %v888 = vmax.f32 %v886, %v857
        %v889 = vmax.f32 %v887, %v863
        %v890 = vmax.f32 %v888, %v869
        %v891 = vmax.f32 %v889, %v875
        %v892 = vmax.f32 %v890, %v881
        %v893 = vmax.f32 %v891, %v892
        %v894 = vrot.slane %v893, 4
        %v895 = vmax.f32 %v893, %v894
        %v896 = vrot.slane %v895, 2
        %v897 = vmax.f32 %v895, %v896
        %v898 = vrot.slane %v897, 1
        %v899 = vmax.f32 %v897, %v898
        %v900 = vmax.f32 %v829, %v841
        %v901 = vmax.f32 %v835, %v847
        %v902 = vmax.f32 %v900, %v853
        %v903 = vmax.f32 %v901, %v859
        %v904 = vmax.f32 %v902, %v865
        %v905 = vmax.f32 %v903, %v871
        %v906 = vmax.f32 %v904, %v877
        %v907 = vmax.f32 %v905, %v883
        %v908 = vmax.f32 %v906, %v907
        %v909 = vrot.slane %v908, 4
        %v910 = vmax.f32 %v908, %v909
        %v911 = vrot.slane %v910, 2
        %v912 = vmax.f32 %v910, %v911
        %v913 = vrot.slane %v912, 1
        %v914 = vmax.f32 %v912, %v913
        %v915 = vsub.f32 %v827, %v899
        %v916 = vsub.f32 %v829, %v914
        %v917 = vsub.f32 %v833, %v899
        %v918 = vsub.f32 %v835, %v914
        %v919 = vsub.f32 %v839, %v899
        %v920 = vsub.f32 %v841, %v914
        %v921 = vsub.f32 %v845, %v899
        %v922 = vsub.f32 %v847, %v914
        %v923 = vsub.f32 %v851, %v899
        %v924 = vsub.f32 %v853, %v914
        %v925 = vsub.f32 %v857, %v899
        %v926 = vsub.f32 %v859, %v914
        %v927 = vsub.f32 %v863, %v899
        %v928 = vsub.f32 %v865, %v914
        %v929 = vsub.f32 %v869, %v899
        %v930 = vsub.f32 %v871, %v914
        %v931 = vsub.f32 %v875, %v899
        %v932 = vsub.f32 %v877, %v914
        %v933 = vsub.f32 %v881, %v899
        %v934 = vsub.f32 %v883, %v914
        %v935 = vmul.f32 %v915, 1.442695
        %v936 = vpow.pop %v935
        %v937 = vmul.f32 %v916, 1.442695
        %v938 = vpow.pop %v937
        %v939 = vmul.f32 %v917, 1.442695
        %v940 = vpow.pop %v939
        %v941 = vmul.f32 %v918, 1.442695
        %v942 = vpow.pop %v941
        %v943 = vmul.f32 %v919, 1.442695
        %v944 = vpow.pop %v943
        %v945 = vmul.f32 %v920, 1.442695
        %v946 = vpow.pop %v945
        %v947 = vmul.f32 %v921, 1.442695
        %v948 = vpow.pop %v947
        %v949 = vmul.f32 %v922, 1.442695
        %v950 = vpow.pop %v949
        %v951 = vmul.f32 %v923, 1.442695
        %v952 = vpow.pop %v951
        %v953 = vmul.f32 %v924, 1.442695
        %v954 = vpow.pop %v953
        %v955 = vmul.f32 %v925, 1.442695
        %v956 = vpow.pop %v955
        %v957 = vmul.f32 %v926, 1.442695
        %v958 = vpow.pop %v957
        %v959 = vmul.f32 %v927, 1.442695
        %v960 = vpow.pop %v959
        %v961 = vmul.f32 %v928, 1.442695
        %v962 = vpow.pop %v961
        %v963 = vmul.f32 %v929, 1.442695
        %v964 = vpow.pop %v963
        %v965 = vmul.f32 %v930, 1.442695
        %v966 = vpow.pop %v965
        %v967 = vmul.f32 %v931, 1.442695
        %v968 = vpow.pop %v967
        %v969 = vmul.f32 %v932, 1.442695
        %v970 = vpow.pop %v969
        %v971 = vmul.f32 %v933, 1.442695
        %v972 = vpow.pop %v971
        %v973 = vmul.f32 %v934, 1.442695
        %v974 = vpow.pop %v973
        %975 = vmatprep.subr.mxu0 0.0
        %976 = vmatpush1.msra.mxu0 0.0
        %977 = vmatprep.subr.mxu0 0.0
        %978 = vmatpush1.msra.mxu0 0.0
        %979 = vmatprep.subr.mxu0 0.0
        %980 = vmatpush1.msra.mxu0 0.0
        %981 = vmatprep.subr.mxu0 0.0
        %982 = vmatpush1.msra.mxu0 0.0
        %983 = vmatprep.subr.mxu0 0.0
        %984 = vmatpush1.msra.mxu0 0.0
        %985 = vmatprep.subr.mxu0 0.0
        %986 = vmatpush1.msra.mxu0 0.0
        %987 = vmatprep.subr.mxu0 %v974
        %988 = vmatpush1.msra.mxu0 %v972
        %989 = vmatprep.subr.mxu0 %v970
        %990 = vmatpush1.msra.mxu0 %v968
        %991 = vmatprep.subr.mxu0 %v966
        %992 = vmatpush1.msra.mxu0 %v964
        %993 = vmatprep.subr.mxu0 %v962
        %994 = vmatpush1.msra.mxu0 %v960
        %995 = vmatprep.subr.mxu0 %v958
        %996 = vmatpush1.msra.mxu0 %v956
        %997 = vmatprep.subr.mxu0 %v954
        %998 = vmatpush1.msra.mxu0 %v952
        %999 = vmatprep.subr.mxu0 %v950
        %1000 = vmatpush1.msra.mxu0 %v948
        %1001 = vmatprep.subr.mxu0 %v946
        %1002 = vmatpush1.msra.mxu0 %v944
        %1003 = vmatprep.subr.mxu0 %v942
        %1004 = vmatpush1.msra.mxu0 %v940
        %1005 = vmatprep.subr.mxu0 %v938
        %1006 = vmatpush1.msra.mxu0 %v936
        %1007 = vmatprep.subr.mxu0 0.0
        %1008 = vmatpush2.msra.mxu0 0.0
        %1009 = vmatprep.subr.mxu0 0.0
        %1010 = vmatpush2.msra.mxu0 0.0
        %1011 = vmatprep.subr.mxu0 0.0
        %1012 = vmatpush2.msra.mxu0 0.0
        %1013 = vmatprep.subr.mxu0 0.0
        %1014 = vmatpush2.msra.mxu0 0.0
        %1015 = vmatprep.subr.mxu0 0.0
        %1016 = vmatpush2.msra.mxu0 0.0
        %1017 = vmatprep.subr.mxu0 0.0
        %1018 = vmatpush2.msra.mxu0 0.0
        %1019 = vmatprep.subr.mxu0 0.0
        %1020 = vmatpush2.msra.mxu0 0.0
        %1021 = vmatprep.subr.mxu0 0.0
        %1022 = vmatpush2.msra.mxu0 0.0
        %1023 = vmatprep.subr.mxu0 0.0
        %1024 = vmatpush2.msra.mxu0 0.0
        %1025 = vmatprep.subr.mxu0 0.0
        %1026 = vmatpush2.msra.mxu0 0.0
        %1027 = vmatprep.subr.mxu0 0.0
        %1028 = vmatpush2.msra.mxu0 0.0
        %1029 = vmatprep.subr.mxu0 0.0
        %1030 = vmatpush2.msra.mxu0 0.0
        %1031 = vmatprep.subr.mxu0 0.0
        %1032 = vmatpush2.msra.mxu0 0.0
        %1033 = vmatprep.subr.mxu0 0.0
        %1034 = vmatpush2.msra.mxu0 0.0
        %1035 = vmatprep.subr.mxu0 0.0
        %1036 = vmatpush2.msra.mxu0 0.0
        %1037 = vmatprep.subr.mxu0 0.0
        %1038 = vmatpush2.msra.mxu0 0.0
        %1039 = vmatprep.mubr.f32.mxu0 0.0
        %1040 = vmatmul.mubr.f32.gmra.mxu0 %v554
        %v1041 = vpop.f32.mrf.mxu0
        %v1042 = vadd.f32 0.0, %v1041
        %v1043 = vpop.f32.mrf.mxu0
        %v1044 = vadd.f32 0.0, %v1043
        %1045 = vdwg.mxu0
        %v1048 = vrot.slane %v1042, 1
        %v1049 = vrot.slane %v1044, 1
        %v1052 = vrcp.pop %v1048
        %v1053 = vmul.f32 %v1042, %v1052
        %v1054 = vrcp.pop %v1049
        %v1055 = vmul.f32 %v1044, %v1054
        %v1058 = vcombine.low %v1053, %v1055
        %v1060 = vunpack.c.l.s4 1966171168
        %v1061 = vunpack.c.0.s8 %v1060
        %v1062 = vlaneseq
        %v1063 = vshrl.u32 %v1062, 7
        %v1064 = vsub.s32 %v1061, %v1063
        %v1065 = vrot.slane %v1058, %v1064
        %v1067 = vunpack.c.l.s4 1966171168
        %v1068 = vunpack.c.0.s8 %v1067
        %v1069 = vlaneseq
        %v1070 = vshrl.u32 %v1069, 7
        %v1071 = vsub.s32 %v1068, %v1070
        %v1072 = vrot.slane %v1065, %v1071
        %s1074 = scalar_lea.vmem %s215, 1 [#allocation2]
        %1075 = vst.msk [vmem:[%s1074] ss:$2 sm:$0x3] %vm658, %v1072
        %s1076 = sand.u32 %s131, 1
        %s1077 = scalar_lea.sflag [#allocation3], %s1076
        %s1078 = sand.u32 %s131, 1
        %s1079 = smul.addr %s1078, 4
        %s1080 = scalar_lea.vmem [#allocation2], %s1079
        // Predicated region
        $region37: #{tpu_custom_call.1} parent=35 // pred_check
          %p1081 = pneg %p141
        $region38: #{tpu_custom_call.1} parent=35 // pred_check_branch
          %1083 = sbr.rel (%p1081) target = $region40
        $region39: #{tpu_custom_call.1} parent=35 // pred_region
          %s1084 = smul.u32 2, %s23
          %s1086 = ssub.s32 64, 64
          %1087 = vsyncadd %s1077, %s1086
          %s1088 = smul.addr %s22, 2
          %s1089 = sadd.s32 %s1084, %s1088
          %s1090 = smul.addr %s1089, 32
          %s1091 = scalar_lea.hbm %s4, %s1090
          %s1093 = sshll.u32 %s1080, 4
          %s1094 = int_to_ptr.vmem [resolvable:$true] %s1093
          %1096 = dma.vmem_to_hbm [thread:$0]  %s1094, 64, %s1091, %s1077
        $region40: #{tpu_custom_call.1} parent=35 // pred_fallthru
          _
      $region36: #{tpu_custom_call.1} parent=5 // pred_fallthru
        _
      %p1097 = scmp.le.s32.totalorder 2, %s13
      // Predicated region
      $region41: #{tpu_custom_call.1} parent=5 // pred_check
        %p1098 = pneg %p1097
      $region42: #{tpu_custom_call.1} parent=5 // pred_check_branch
        %1100 = sbr.rel (%p1098) target = $region44
      $region43: #{tpu_custom_call.1} parent=5 // pred_region
        %s1101 = ssub.s32 %s13, 2
        // Predicated region
        $region45: #{tpu_custom_call.1} parent=43 // pred_check
          %p1102 = pneg %p147
        $region46: #{tpu_custom_call.1} parent=43 // pred_check_branch
          %1104 = sbr.rel (%p1102) target = $region48
        $region47: #{tpu_custom_call.1} parent=43 // pred_region
          %s1105 = sand.u32 %s132, 1
          %s1106 = scalar_lea.sflag [#allocation3], %s1105
          %s1107 = sand.u32 %s132, 1
          %s1108 = smul.addr %s1107, 4
          %s1109 = scalar_lea.vmem [#allocation2], %s1108
          %1110 = dma.done %s1106, 64
        $region48: #{tpu_custom_call.1} parent=43 // pred_fallthru
          _
      $region44: #{tpu_custom_call.1} parent=5 // pred_fallthru
        _
    $region6: #{tpu_custom_call.1} parent=1 // loop_footer
      %s17 = sadd.s32 1, %s13
    $region7: #{tpu_custom_call.1} parent=1 // loop_footer_branch
      %12 = sbr.rel target = $region3
    $region8: #{tpu_custom_call.1} parent=1 // loop_exit
      _
    %1111 = vsyncpa [#allocation3], 1
    %s1112 = scalar_lea.sflag [#allocation3], 1
    %1113 = vsyncpa %s1112, 1

</llo_original>
